<compile_context>
chip_gen: v5e
topology: v5e:2x2
jax: 0.10.0
libtpu: 0.0.40
codegen_flags: <defaults>
</compile_context>

<pallas_src>
import functools

import jax
import jax.numpy as jnp
from jax.experimental import pallas as pl
from jax.experimental.pallas import tpu as pltpu

HIDDEN = 128


def _critic_kernel(x_ref, w1_ref, b1_ref, w2_ref, b2_ref, w3_ref, b3_ref, o_ref,
                   *, matmul_dtype):
    """Fused 3-layer MLP for one (tb, F) batch tile. Weights stay resident in VMEM."""
    x = x_ref[...].astype(matmul_dtype)                                  # (tb, F)

    h1 = jnp.tanh(
        jnp.dot(x, w1_ref[...].astype(matmul_dtype),
                preferred_element_type=jnp.float32) + b1_ref[...])       # (tb, H) f32

    h2 = jnp.tanh(
        jnp.dot(h1.astype(matmul_dtype), w2_ref[...].astype(matmul_dtype),
                preferred_element_type=jnp.float32) + b2_ref[...])       # (tb, H) f32

    # Last layer (H -> 1): VPU multiply + lane reduction against w3 as a (1, H) row,
    # plus scalar bias from SMEM. Result is written as a lane-dense (1, tb) row.
    vals = jnp.sum(h2 * w3_ref[...], axis=-1) + b3_ref[0]                # (tb,)
    o_ref[...] = vals[None, :].astype(o_ref.dtype)                       # (1, tb)


def critic_forward(x, params, *, tb=None, matmul_dtype=jnp.float32):
    """x: [..., F] float32 -> values [...] float32 (matches Critic.forward squeeze(-1)).

    params = (w1 [F,H], b1 [H], w2 [H,H], b2 [H], w3 [H], b3 []) with W stored as
    [in, out] (transposed vs. torch's [out, in]) so the kernel computes x @ W + b.
    """
    w1, b1, w2, b2, w3, b3 = params
    lead = x.shape[:-1]
    F = x.shape[-1]
    H = HIDDEN

    x2 = jnp.asarray(x, jnp.float32).reshape(-1, F)
    B = x2.shape[0]

    # --- batch tile selection ---------------------------------------------------
    if tb is None:
        tb = 512                      # good default for v6e/v7x; fine on v5e too
    if B <= tb:
        tb = B                        # single grid step; block == full array, no pad
        n_tiles = 1
        B_pad = B
    else:
        tb = max(128, (tb // 128) * 128)   # lane/sublane aligned tile when tiling
        n_tiles = -(-B // tb)
        B_pad = n_tiles * tb
    x_p = x2 if B_pad == B else jnp.pad(x2, ((0, B_pad - B), (0, 0)))

    # --- parameter shapes the kernel expects ------------------------------------
    w1r = jnp.asarray(w1, jnp.float32).reshape(F, H)
    w2r = jnp.asarray(w2, jnp.float32).reshape(H, H)
    b1r = jnp.asarray(b1, jnp.float32).reshape(1, H)
    b2r = jnp.asarray(b2, jnp.float32).reshape(1, H)
    w3r = jnp.asarray(w3, jnp.float32).reshape(1, H)   # row vector, not (H, 1)
    b3r = jnp.asarray(b3, jnp.float32).reshape(1)      # scalar, lives in SMEM

    # --- VMEM budget (double-buffered x/out tiles + resident weights) -----------
    weight_bytes = 4 * (F * H + H * H + 3 * H + 1)
    io_bytes = 4 * 2 * (tb * F + tb)                   # 2x double-buffering
    vmem_limit = int(min(max(2 * weight_bytes + 2 * io_bytes + (4 << 20), 16 << 20),
                         48 << 20))                    # stays under v7x's 64 MiB

    out = pl.pallas_call(
        functools.partial(_critic_kernel, matmul_dtype=matmul_dtype),
        out_shape=jax.ShapeDtypeStruct((1, B_pad), jnp.float32),
        grid_spec=pltpu.PrefetchScalarGridSpec(
            num_scalar_prefetch=0,
            grid=(n_tiles,),
            in_specs=[
                pl.BlockSpec((tb, F), lambda i: (i, 0)),            # x tile
                pl.BlockSpec((F, H), lambda i: (0, 0)),             # w1 (resident)
                pl.BlockSpec((1, H), lambda i: (0, 0)),             # b1
                pl.BlockSpec((H, H), lambda i: (0, 0)),             # w2
                pl.BlockSpec((1, H), lambda i: (0, 0)),             # b2
                pl.BlockSpec((1, H), lambda i: (0, 0)),             # w3 (row vector)
                pl.BlockSpec(memory_space=pltpu.MemorySpace.SMEM),  # b3 scalar
            ],
            out_specs=pl.BlockSpec((1, tb), lambda i: (0, i)),      # lane-dense row
        ),
        compiler_params=pltpu.CompilerParams(
            dimension_semantics=("parallel",),
            vmem_limit_bytes=vmem_limit,
        ),
    )(x_p, w1r, b1r, w2r, b2r, w3r, b3r)

    return out[0, :B].reshape(lead)


def init_params(num_features, key):
    """Deterministic init mimicking torch.nn.Linear default (U[-1/sqrt(fan_in), +])."""
    k = jax.random.split(key, 6)

    def lin(kw, kb, fan_in, shape_w, shape_b):
        bound = 1.0 / jnp.sqrt(jnp.float32(fan_in))
        w = jax.random.uniform(kw, shape_w, jnp.float32, -bound, bound)
        b = jax.random.uniform(kb, shape_b, jnp.float32, -bound, bound)
        return w, b

    w1, b1 = lin(k[0], k[1], num_features, (num_features, HIDDEN), (HIDDEN,))
    w2, b2 = lin(k[2], k[3], HIDDEN, (HIDDEN, HIDDEN), (HIDDEN,))
    w3, b3 = lin(k[4], k[5], HIDDEN, (HIDDEN,), ())
    return (w1, b1, w2, b2, w3, b3)


def critic_reference(x, params):
    w1, b1, w2, b2, w3, b3 = params
    h1 = jnp.tanh(x @ w1 + b1)
    h2 = jnp.tanh(h1 @ w2 + b2)
    return h2 @ w3 + b3


if __name__ == "__main__":
    key = jax.random.PRNGKey(0)
    kx, kp, kx2 = jax.random.split(key, 3)

    B, F = 16, 32  # small shapes: batch=16, num_features=32
    x = jax.random.normal(kx, (B, F), jnp.float32)
    params = init_params(F, kp)

    # Small-batch path: single grid step (tb = B), no padding.
    values = jax.block_until_ready(critic_forward(x, params))
    ref = critic_reference(x, params)
    assert values.shape == (B,)
    assert jnp.allclose(values, ref, atol=1e-4, rtol=1e-4), "mismatch vs reference (small B)"

    # Tiled path: grid > 1, 128-aligned tiles, padded batch, lane-dense (1, tb) writes.
    B2 = 1000
    x_big = jax.random.normal(kx2, (B2, F), jnp.float32)
    values2 = jax.block_until_ready(critic_forward(x_big, params, tb=512))
    ref2 = critic_reference(x_big, params)
    assert values2.shape == (B2,)
    assert jnp.allclose(values2, ref2, atol=1e-4, rtol=1e-4), "mismatch vs reference (tiled)"

    print("KERNEL_OK")
</pallas_src>

<mosaic_0001>
module attributes {stable_mosaic.version = 11 : i64} {
  func.func @_critic_kernel(%arg0: i32, %arg1: memref<16x32xf32, #tpu.memory_space<vmem>>, %arg2: memref<32x128xf32, #tpu.memory_space<vmem>>, %arg3: memref<1x128xf32, #tpu.memory_space<vmem>>, %arg4: memref<128x128xf32, #tpu.memory_space<vmem>>, %arg5: memref<1x128xf32, #tpu.memory_space<vmem>>, %arg6: memref<1x128xf32, #tpu.memory_space<vmem>>, %arg7: memref<1xf32, #tpu.memory_space<smem>>, %arg8: memref<1x16xf32, #tpu.memory_space<vmem>>) attributes {dimension_semantics = [#tpu.dimension_semantics<parallel>], iteration_bounds = array<i64: 1>, scalar_prefetch = 0 : i64, scratch_operands = 0 : i64, tpu.core_type = #tpu.core_type<tc>, window_params = [{transform_indices = @transform_0, window_bounds = array<i64: 16, 32>}, {pipeline_mode = #tpu.pipeline_mode<synchronous>, transform_indices = @transform_1, window_bounds = array<i64: 32, 128>}, {pipeline_mode = #tpu.pipeline_mode<synchronous>, transform_indices = @transform_2, window_bounds = array<i64: 1, 128>}, {pipeline_mode = #tpu.pipeline_mode<synchronous>, transform_indices = @transform_3, window_bounds = array<i64: 128, 128>}, {pipeline_mode = #tpu.pipeline_mode<synchronous>, transform_indices = @transform_4, window_bounds = array<i64: 1, 128>}, {pipeline_mode = #tpu.pipeline_mode<synchronous>, transform_indices = @transform_5, window_bounds = array<i64: 1, 128>}, {transform_indices = @transform_6, window_bounds = array<i64: 1>}, {transform_indices = @transform_7, window_bounds = array<i64: 1, 16>}]} {
    %c0 = arith.constant 0 : index
    %c0_0 = arith.constant 0 : index
    %0 = vector.load %arg1[%c0, %c0_0] : memref<16x32xf32, #tpu.memory_space<vmem>>, vector<16x32xf32>
    %c0_1 = arith.constant 0 : index
    %c0_2 = arith.constant 0 : index
    %1 = vector.load %arg2[%c0_1, %c0_2] : memref<32x128xf32, #tpu.memory_space<vmem>>, vector<32x128xf32>
    %cst = arith.constant dense<0.000000e+00> : vector<16x128xf32>
    %2 = tpu.matmul %0, %1, %cst {dimension_numbers = #tpu.dot_dimension_numbers<[1], [0], [0], [1], [0, 0, 1, 1], [], []>} : vector<16x32xf32>, vector<32x128xf32>, vector<16x128xf32> -> vector<16x128xf32>
    %c0_3 = arith.constant 0 : index
    %c0_4 = arith.constant 0 : index
    %3 = vector.load %arg3[%c0_3, %c0_4] : memref<1x128xf32, #tpu.memory_space<vmem>>, vector<1x128xf32>
    %4 = vector.broadcast %3 : vector<1x128xf32> to vector<16x128xf32>
    %5 = arith.addf %2, %4 : vector<16x128xf32>
    %6 = math.tanh %5 : vector<16x128xf32>
    %c0_5 = arith.constant 0 : index
    %c0_6 = arith.constant 0 : index
    %7 = vector.load %arg4[%c0_5, %c0_6] : memref<128x128xf32, #tpu.memory_space<vmem>>, vector<128x128xf32>
    %cst_7 = arith.constant dense<0.000000e+00> : vector<16x128xf32>
    %8 = tpu.matmul %6, %7, %cst_7 {dimension_numbers = #tpu.dot_dimension_numbers<[1], [0], [0], [1], [0, 0, 1, 1], [], []>} : vector<16x128xf32>, vector<128x128xf32>, vector<16x128xf32> -> vector<16x128xf32>
    %c0_8 = arith.constant 0 : index
    %c0_9 = arith.constant 0 : index
    %9 = vector.load %arg5[%c0_8, %c0_9] : memref<1x128xf32, #tpu.memory_space<vmem>>, vector<1x128xf32>
    %10 = vector.broadcast %9 : vector<1x128xf32> to vector<16x128xf32>
    %11 = arith.addf %8, %10 : vector<16x128xf32>
    %12 = math.tanh %11 : vector<16x128xf32>
    %c0_10 = arith.constant 0 : index
    %c0_11 = arith.constant 0 : index
    %13 = vector.load %arg6[%c0_10, %c0_11] : memref<1x128xf32, #tpu.memory_space<vmem>>, vector<1x128xf32>
    %14 = vector.broadcast %13 : vector<1x128xf32> to vector<16x128xf32>
    %15 = arith.mulf %12, %14 : vector<16x128xf32>
    %cst_12 = arith.constant dense<0.000000e+00> : vector<16xf32>
    %16 = vector.multi_reduction <add>, %15, %cst_12 [1] : vector<16x128xf32> to vector<16xf32>
    %c0_13 = arith.constant 0 : index
    %17 = memref.load %arg7[%c0_13] : memref<1xf32, #tpu.memory_space<smem>>
    %18 = vector.broadcast %17 : f32 to vector<16xf32>
    %19 = arith.addf %16, %18 : vector<16xf32>
    %20 = vector.shape_cast %19 : vector<16xf32> to vector<1x16xf32>
    %c0_14 = arith.constant 0 : index
    %c0_15 = arith.constant 0 : index
    %21 = vector.load %arg8[%c0_14, %c0_15] : memref<1x16xf32, #tpu.memory_space<vmem>>, vector<1x16xf32>
    tpu.vector_store %arg8[%c0_14, %c0_15], %20 {strides = array<i32>} : memref<1x16xf32, #tpu.memory_space<vmem>>, vector<1x16xf32>,
    return
  }
  func.func @transform_0(%arg0: i32) -> (i32, i32) {
    %c0_i32 = arith.constant 0 : i32
    %c0_i32_0 = arith.constant 0 : i32
    return %arg0, %c0_i32 : i32, i32
  }
  func.func @transform_1(%arg0: i32) -> (i32, i32) {
    %c0_i32 = arith.constant 0 : i32
    %c0_i32_0 = arith.constant 0 : i32
    %c0_i32_1 = arith.constant 0 : i32
    return %c0_i32, %c0_i32_0 : i32, i32
  }
  func.func @transform_2(%arg0: i32) -> (i32, i32) {
    %c0_i32 = arith.constant 0 : i32
    %c0_i32_0 = arith.constant 0 : i32
    %c0_i32_1 = arith.constant 0 : i32
    return %c0_i32, %c0_i32_0 : i32, i32
  }
  func.func @transform_3(%arg0: i32) -> (i32, i32) {
    %c0_i32 = arith.constant 0 : i32
    %c0_i32_0 = arith.constant 0 : i32
    %c0_i32_1 = arith.constant 0 : i32
    return %c0_i32, %c0_i32_0 : i32, i32
  }
  func.func @transform_4(%arg0: i32) -> (i32, i32) {
    %c0_i32 = arith.constant 0 : i32
    %c0_i32_0 = arith.constant 0 : i32
    %c0_i32_1 = arith.constant 0 : i32
    return %c0_i32, %c0_i32_0 : i32, i32
  }
  func.func @transform_5(%arg0: i32) -> (i32, i32) {
    %c0_i32 = arith.constant 0 : i32
    %c0_i32_0 = arith.constant 0 : i32
    %c0_i32_1 = arith.constant 0 : i32
    return %c0_i32, %c0_i32_0 : i32, i32
  }
  func.func @transform_6(%arg0: i32) -> i32 {
    %c0_i32 = arith.constant 0 : i32
    %c0_i32_0 = arith.constant 0 : i32
    return %c0_i32 : i32
  }
  func.func @transform_7(%arg0: i32) -> (i32, i32) {
    %c0_i32 = arith.constant 0 : i32
    %c0_i32_0 = arith.constant 0 : i32
    return %c0_i32, %arg0 : i32, i32
  }
}

</mosaic_0001>

<llo_original>
// kernel: tpu_custom_call.1
$region0: #{tpu_custom_call.1}
  #allocation0 [shape = 'u32[]', space=smem, size = 0x4, offset = 0x4, fixed_abs, tag = 'smem constant byte address 0x4 - core index']
  #allocation1 [shape = 'u32[72,128]{1,0:T(1,128)}', space=vmem, size = 0x9000, scoped, tag = 'internal scratch']
  #allocation2 [shape = 'f32[1]{0:T(128)S(6)}', space=smem, size = 0x200, scoped, tag = 'scoped memory for tpu_custom_call.1']
  %s0 = inlined_call_operand.hbm [shape: f32[16,32], index: 0, kind: input, shape index: {}]
  %s1 = inlined_call_operand.hbm [shape: f32[32,128], index: 1, kind: input, shape index: {}]
  %s2 = inlined_call_operand.vmem [shape: f32[1,128], index: 2, kind: input, shape index: {}]
  %s3 = inlined_call_operand.hbm [shape: f32[128,128], index: 3, kind: input, shape index: {}]
  %s4 = inlined_call_operand.vmem [shape: f32[1,128], index: 4, kind: input, shape index: {}]
  %s5 = inlined_call_operand.vmem [shape: f32[1,128], index: 5, kind: input, shape index: {}]
  %s6 = inlined_call_operand.<no memory space> [shape: f32[1], index: 6, kind: input, shape index: {}]
  %s7 = inlined_call_operand.hbm [shape: f32[1,16], index: 7, kind: output, shape index: {}]
  %s8 = sld [smem:[#allocation0]]
  $region50: #{tpu_custom_call.1} parent=0
    _
  %s10 = ssub.s32 1, %s8
  %s11 = scalar_select 0, %s10, %s8
  %12 = sst [smem:[#allocation2]] %s6
  $region1: #{tpu_custom_call.1} parent=0
    #allocation3 [shape = 'u8[8192]{0}', space=vmem, size = 0x2000, scoped, tag = 'input window, operand 0, single buffered']
    #allocation4 [shape = 's32[1]{0}', space=sflag, size = 0x4, scoped, tag = 'scoped memory for tpu_custom_call.1']
    #allocation5 [shape = 's32[1]{0}', space=sflag, size = 0x4, scoped, tag = 'scoped memory for tpu_custom_call.1']
    #allocation6 [shape = 'u8[16384]{0}', space=vmem, size = 0x4000, scoped, tag = 'input window, operand 1, single buffered']
    #allocation7 [shape = 's32[1]{0}', space=sflag, size = 0x4, scoped, tag = 'scoped memory for tpu_custom_call.1']
    #allocation8 [shape = 'u8[65536]{0}', space=vmem, size = 0x10000, scoped, tag = 'input window, operand 3, single buffered']
    #allocation9 [shape = 'u8[512]{0}', space=vmem, size = 0x400, scoped, tag = 'output window, operand 0, single buffered']
    %13 = vsyncpa [#allocation4], 0
    %14 = vsyncpa [#allocation7], 0
    %15 = vsyncpa [#allocation5], 0
    // Predicated region
    $region2: #{tpu_custom_call.1} parent=1 // pred_check
      _
    $region3: #{tpu_custom_call.1} parent=1 // pred_check_branch
      %17 = sbr.rel (0) target = $region5
    $region4: #{tpu_custom_call.1} parent=1 // pred_region
      %19 = vsyncadd [#allocation4], 0
      %s20 = sshll.u32 %s0, 4
      %s21 = int_to_ptr.hbm [resolvable:$true] %s20
      %s22 = sshll.u32 [#allocation3], 4
      %s23 = int_to_ptr.vmem [resolvable:$true] %s22
      %28 = dma.hbm_to_vmem [thread:$0]  %s21, 256, %s23, [#allocation4], 128, 128, 8
    $region5: #{tpu_custom_call.1} parent=1 // pred_fallthru
      _
    // Predicated region
    $region6: #{tpu_custom_call.1} parent=1 // pred_check
      _
    $region7: #{tpu_custom_call.1} parent=1 // pred_check_branch
      %30 = sbr.rel (0) target = $region9
    $region8: #{tpu_custom_call.1} parent=1 // pred_region
      %32 = vsyncadd [#allocation7], 0
      %s33 = sshll.u32 %s1, 4
      %s34 = int_to_ptr.hbm [resolvable:$true] %s33
      %s35 = sshll.u32 [#allocation6], 4
      %s36 = int_to_ptr.vmem [resolvable:$true] %s35
      %41 = dma.hbm_to_vmem [thread:$0]  %s34, 512, %s36, [#allocation7], 128, 128, 8
    $region9: #{tpu_custom_call.1} parent=1 // pred_fallthru
      _
    // Predicated region
    $region10: #{tpu_custom_call.1} parent=1 // pred_check
      _
    $region11: #{tpu_custom_call.1} parent=1 // pred_check_branch
      %43 = sbr.rel (0) target = $region13
    $region12: #{tpu_custom_call.1} parent=1 // pred_region
      _
    $region13: #{tpu_custom_call.1} parent=1 // pred_fallthru
      _
    // Predicated region
    $region14: #{tpu_custom_call.1} parent=1 // pred_check
      _
    $region15: #{tpu_custom_call.1} parent=1 // pred_check_branch
      %45 = sbr.rel (0) target = $region17
    $region16: #{tpu_custom_call.1} parent=1 // pred_region
      %47 = vsyncadd [#allocation7], 0
      %s48 = sshll.u32 %s3, 4
      %s49 = int_to_ptr.hbm [resolvable:$true] %s48
      %s50 = sshll.u32 [#allocation8], 4
      %s51 = int_to_ptr.vmem [resolvable:$true] %s50
      %56 = dma.hbm_to_vmem [thread:$0]  %s49, 2048, %s51, [#allocation7], 128, 128, 8
    $region17: #{tpu_custom_call.1} parent=1 // pred_fallthru
      _
    // Predicated region
    $region18: #{tpu_custom_call.1} parent=1 // pred_check
      _
    $region19: #{tpu_custom_call.1} parent=1 // pred_check_branch
      %58 = sbr.rel (0) target = $region21
    $region20: #{tpu_custom_call.1} parent=1 // pred_region
      _
    $region21: #{tpu_custom_call.1} parent=1 // pred_fallthru
      _
    // Predicated region
    $region22: #{tpu_custom_call.1} parent=1 // pred_check
      _
    $region23: #{tpu_custom_call.1} parent=1 // pred_check_branch
      %60 = sbr.rel (0) target = $region25
    $region24: #{tpu_custom_call.1} parent=1 // pred_region
      _
    $region25: #{tpu_custom_call.1} parent=1 // pred_fallthru
      _
    // Predicated region
    $region26: #{tpu_custom_call.1} parent=1 // pred_check
      _
    $region27: #{tpu_custom_call.1} parent=1 // pred_check_branch
      %62 = sbr.rel (0) target = $region29
    $region28: #{tpu_custom_call.1} parent=1 // pred_region
      _
    $region29: #{tpu_custom_call.1} parent=1 // pred_fallthru
      _
    // Predicated region
    $region30: #{tpu_custom_call.1} parent=1 // pred_check
      _
    $region31: #{tpu_custom_call.1} parent=1 // pred_check_branch
      %64 = sbr.rel (0) target = $region33
    $region32: #{tpu_custom_call.1} parent=1 // pred_region
      %66 = dma.done [#allocation4], 256
    $region33: #{tpu_custom_call.1} parent=1 // pred_fallthru
      _
    // Predicated region
    $region34: #{tpu_custom_call.1} parent=1 // pred_check
      _
    $region35: #{tpu_custom_call.1} parent=1 // pred_check_branch
      %68 = sbr.rel (0) target = $region37
    $region36: #{tpu_custom_call.1} parent=1 // pred_region
      %70 = dma.done [#allocation7], 512
    $region37: #{tpu_custom_call.1} parent=1 // pred_fallthru
      _
    // Predicated region
    $region38: #{tpu_custom_call.1} parent=1 // pred_check
      _
    $region39: #{tpu_custom_call.1} parent=1 // pred_check_branch
      %72 = sbr.rel (0) target = $region41
    $region40: #{tpu_custom_call.1} parent=1 // pred_region
      %74 = dma.done [#allocation7], 2048
    $region41: #{tpu_custom_call.1} parent=1 // pred_fallthru
      _
    %v75 = vld [vmem:[#allocation3] sm:$0xff]
    %v76 = vld [vmem:[#allocation3 + $0x8] sm:$0xff]
    %v77 = vld [vmem:[#allocation6] sm:$0xff]
    %v78 = vld [vmem:[#allocation6 + $0x8] sm:$0xff]
    %v79 = vld [vmem:[#allocation6 + $0x10] sm:$0xff]
    %v80 = vld [vmem:[#allocation6 + $0x18] sm:$0xff]
    %v81 = vld [vmem:[%s2] sm:$0x1]
    %v83 = vperm.slane %v81, 0
    %vm85 = vcmask 261120
    %v87 = vsel %vm85, %v75, 0
    %v90 = vsel %vm85, %v76, 0
    %92 = vmatpush.msra.mxu0 0.0
    %93 = vmatpush.msra.mxu0 0.0
    %94 = vmatpush.msra.mxu0 0.0
    %95 = vmatpush.msra.mxu0 0.0
    %96 = vmatpush.msra.mxu0 0.0
    %97 = vmatpush.msra.mxu0 0.0
    %98 = vmatpush.msra.mxu0 0.0
    %99 = vmatpush.msra.mxu0 0.0
    %100 = vmatpush.msra.mxu0 0.0
    %101 = vmatpush.msra.mxu0 0.0
    %102 = vmatpush.msra.mxu0 0.0
    %103 = vmatpush.msra.mxu0 0.0
    %104 = vmatpush.msra.mxu0 %v80
    %105 = vmatpush.msra.mxu0 %v79
    %106 = vmatpush.msra.mxu0 %v78
    %107 = vmatpush.msra.mxu0 %v77
    %108 = vmatmul.f32.gmra.mxu0 %v87
    %v109 = vpop.f32.mrf.mxu0
    %v110 = vadd.f32 %v83, %v109
    %111 = vmatmul.f32.gmra.mxu0 %v90
    %v112 = vpop.f32.mrf.mxu0
    %v113 = vadd.f32 %v83, %v112
    %114 = vdwg.mxu0
    %v115 = vtanh.pop %v110
    %v116 = vtanh.pop %v113
    %v117 = vld [vmem:[#allocation8] sm:$0xff]
    %v118 = vld [vmem:[#allocation8 + $0x8] sm:$0xff]
    %v119 = vld [vmem:[#allocation8 + $0x10] sm:$0xff]
    %v120 = vld [vmem:[#allocation8 + $0x18] sm:$0xff]
    %v121 = vld [vmem:[#allocation8 + $0x20] sm:$0xff]
    %v122 = vld [vmem:[#allocation8 + $0x28] sm:$0xff]
    %v123 = vld [vmem:[#allocation8 + $0x30] sm:$0xff]
    %v124 = vld [vmem:[#allocation8 + $0x38] sm:$0xff]
    %v125 = vld [vmem:[#allocation8 + $0x40] sm:$0xff]
    %v126 = vld [vmem:[#allocation8 + $0x48] sm:$0xff]
    %v127 = vld [vmem:[#allocation8 + $0x50] sm:$0xff]
    %v128 = vld [vmem:[#allocation8 + $0x58] sm:$0xff]
    %v129 = vld [vmem:[#allocation8 + $0x60] sm:$0xff]
    %v130 = vld [vmem:[#allocation8 + $0x68] sm:$0xff]
    %v131 = vld [vmem:[#allocation8 + $0x70] sm:$0xff]
    %v132 = vld [vmem:[#allocation8 + $0x78] sm:$0xff]
    %v133 = vld [vmem:[%s4] sm:$0x1]
    %v135 = vperm.slane %v133, 0
    %137 = vmatpush.msra.mxu0 %v132
    %138 = vmatpush.msra.mxu0 %v131
    %139 = vmatpush.msra.mxu0 %v130
    %140 = vmatpush.msra.mxu0 %v129
    %141 = vmatpush.msra.mxu0 %v128
    %142 = vmatpush.msra.mxu0 %v127
    %143 = vmatpush.msra.mxu0 %v126
    %144 = vmatpush.msra.mxu0 %v125
    %145 = vmatpush.msra.mxu0 %v124
    %146 = vmatpush.msra.mxu0 %v123
    %147 = vmatpush.msra.mxu0 %v122
    %148 = vmatpush.msra.mxu0 %v121
    %149 = vmatpush.msra.mxu0 %v120
    %150 = vmatpush.msra.mxu0 %v119
    %151 = vmatpush.msra.mxu0 %v118
    %152 = vmatpush.msra.mxu0 %v117
    %153 = vmatmul.f32.gmra.mxu0 %v115
    %v154 = vpop.f32.mrf.mxu0
    %v155 = vadd.f32 %v135, %v154
    %156 = vmatmul.f32.gmra.mxu0 %v116
    %v157 = vpop.f32.mrf.mxu0
    %v158 = vadd.f32 %v135, %v157
    %159 = vdwg.mxu0
    %v160 = vtanh.pop %v155
    %v161 = vtanh.pop %v158
    %v162 = vld [vmem:[%s5] sm:$0x1]
    %v164 = vperm.slane %v162, 0
    %v166 = vmul.f32 %v160, %v164
    %v167 = vmul.f32 %v161, %v164
    %168 = vadd.xlane.f32.xlu0 %v166
    %v169 = vpop.xlane.xlu0 %168
    %170 = vadd.xlane.f32.xlu0 %v167
    %v171 = vpop.xlane.xlu0 %170
    %s172 = sld [smem:[#allocation2]]
    %v173 = vstv %s172
    %v174 = vadd.f32 %v169, %v173
    %v175 = vadd.f32 %v171, %v173
    %v178 = vlaneseq
    %v179 = vand.u32 %v178, 127
    %v180 = vperm.slane %v174, %v179
    %v181 = vadd.s32 %v179, 4294967288
    %v182 = vperm.slane %v175, %v181
    %vm183 = vcmask 130112
    %v184 = vsel %vm183, %v182, %v180
    %vm186 = vcmask 122880
    %187 = vst.msk [vmem:[#allocation9] sm:$0x1] %vm186, %v184
    // Predicated region
    $region42: #{tpu_custom_call.1} parent=1 // pred_check
      _
    $region43: #{tpu_custom_call.1} parent=1 // pred_check_branch
      %189 = sbr.rel (0) target = $region45
    $region44: #{tpu_custom_call.1} parent=1 // pred_region
      %191 = vsyncadd [#allocation5], 0
      %s193 = sshll.u32 [#allocation9], 4
      %s194 = int_to_ptr.vmem [resolvable:$true] %s193
      %s195 = sshll.u32 %s7, 4
      %s196 = int_to_ptr.hbm [resolvable:$true] %s195
      %198 = dma.vmem_to_hbm [thread:$0]  %s194, 16, %s196, [#allocation5]
    $region45: #{tpu_custom_call.1} parent=1 // pred_fallthru
      _
    // Predicated region
    $region46: #{tpu_custom_call.1} parent=1 // pred_check
      _
    $region47: #{tpu_custom_call.1} parent=1 // pred_check_branch
      %200 = sbr.rel (0) target = $region49
    $region48: #{tpu_custom_call.1} parent=1 // pred_region
      %202 = dma.done [#allocation5], 16
    $region49: #{tpu_custom_call.1} parent=1 // pred_fallthru
      _
    %203 = vsyncpa [#allocation4], 1
    %204 = vsyncpa [#allocation7], 1
    %205 = vsyncpa [#allocation5], 1

</llo_original>
